<compile_context>
chip_gen: v5e
topology: v5e:2x2
jax: 0.10.0
libtpu: 0.0.40
codegen_flags: <defaults>
</compile_context>

<pallas_src>
import functools

import jax
import jax.numpy as jnp
from jax import lax
from jax.experimental import pallas as pl
from jax.experimental.pallas import tpu as pltpu

BN_EPS = 1e-5


def _conv_stats_kernel(x_ref, w_ref, y_ref, mean_ref, m2_ref, *, k, stride, l_out):
    """One batch element: fused-im2col conv (K shifted slices + K dots) + BN partials.

    x_ref:  (1, stride, C_in, Lcols) bf16  -- stride-deinterleaved, zero-padded input
    w_ref:  (K, C_out, C_in) f32
    y_ref:  (1, C_out, L_out) bf16         -- conv output, already in NCL layout
    mean_ref, m2_ref: (1, C_out, 1) f32    -- per-batch-element BN partial stats
    """
    # Hoist each needed stride-phase row once: (C_in, Lcols), cast to f32 for the MXU.
    phases = sorted({dk % stride for dk in range(k)})
    xrows = {r: x_ref[0, r].astype(jnp.float32) for r in phases}

    c_out = w_ref.shape[1]
    acc = jnp.zeros((c_out, l_out), jnp.float32)
    for dk in range(k):                                   # static, tiny K
        off = dk // stride
        xs = xrows[dk % stride][:, off:off + l_out]       # (C_in, L_out), contiguous slice
        acc += jnp.dot(w_ref[dk], xs, preferred_element_type=jnp.float32)

    # Conv output straight into NCL layout, bf16 (halved HBM writeback).
    y_ref[...] = acc[None].astype(y_ref.dtype)

    # Per-batch-element BN partials: mean and M2 (sum of squared deviations).
    mu = jnp.sum(acc, axis=1, keepdims=True) * (1.0 / l_out)     # (C_out, 1)
    d = acc - mu
    mean_ref[...] = mu[None]
    m2_ref[...] = jnp.sum(d * d, axis=1, keepdims=True)[None]


def _bn_relu_kernel(y_ref, scale_ref, shift_ref, o_ref):
    """Streaming elementwise finalize: y*scale + shift, ReLU.  bf16 in, f32 NCL out."""
    y = y_ref[...].astype(jnp.float32)
    o_ref[...] = jnp.maximum(y * scale_ref[...] + shift_ref[...], 0.0)


def _pick_l_tile(l_out, max_tile=4096):
    """Tile along L for the elementwise pass: full length if modest, else a 128-aligned
    divisor (keeps lane-dense, unmasked stores)."""
    if l_out <= max_tile:
        return l_out
    t = max_tile - max_tile % 128
    while t >= 128:
        if l_out % t == 0:
            return t
        t -= 128
    return l_out   # TODO(synk): pad L_out for huge, non-128-divisible lengths


def _compiler_params(dim_sem, per_step_bytes):
    """Generation-aware VMEM budget: derive the limit from per-step footprint + chip cap."""
    cap = 64 * 1024 * 1024                       # conservative fallback (v7x per-TC)
    try:
        info_cap = getattr(pltpu.get_tpu_info(), "vmem_capacity_bytes", None)
        if isinstance(info_cap, int) and info_cap > 0:
            cap = info_cap
    except Exception:
        pass
    limit = int(min((cap * 3) // 4,
                    max(32 * 1024 * 1024, 3 * int(per_step_bytes) + (8 << 20))))
    return pltpu.CompilerParams(dimension_semantics=dim_sem, vmem_limit_bytes=limit)


def down_forward(x, weight, bias, gamma, beta, *, stride, padding):
    """Conv1d -> BatchNorm1d (biased batch stats) -> ReLU.

    x: (N, C_in, L) f32; weight: (C_out, C_in, K); bias/gamma/beta: (C_out,).
    Returns (N, C_out, L_out) f32 in PyTorch NCL layout (no post-transpose needed).
    """
    del bias  # cancels exactly in (y - batch_mean) under training-mode BatchNorm

    n, c_in, length = x.shape
    c_out, _, k = weight.shape
    s = int(stride)
    l_out = (length + 2 * padding - k) // s + 1
    ko = (k - 1) // s                       # extra columns needed by the widest tap
    l_cols = l_out + ko
    target_len = l_cols * s

    # ---- fold the stride into the layout: one cheap XLA pass over x (bf16) ----
    #   x_t[n, r, c, j] == x_zero_padded[n, c, j*s + r]
    pad_hi = padding + max(0, target_len - (length + 2 * padding))
    x_t = jnp.pad(x.astype(jnp.bfloat16), ((0, 0), (0, 0), (padding, pad_hi)))
    x_t = x_t[:, :, :target_len].reshape(n, c_in, l_cols, s)
    x_t = jnp.transpose(x_t, (0, 3, 1, 2))                        # (N, s, C_in, Lcols)

    w_r = jnp.transpose(weight, (2, 0, 1)).astype(jnp.float32)    # (K, C_out, C_in)

    # ---- pass 1: fused-im2col conv + per-batch-element BN partials ----
    step1_bytes = (2 * (s * c_in * l_cols * 2 + c_out * l_out * 2)
                   + k * c_out * c_in * 4 + c_out * l_out * 4)
    cost1 = pl.CostEstimate(
        flops=2 * n * c_out * c_in * k * l_out + 4 * n * c_out * l_out,
        transcendentals=0,
        bytes_accessed=(x_t.size * 2 + w_r.size * 4
                        + n * c_out * l_out * 2 + 2 * n * c_out * 4))
    kernel1 = functools.partial(_conv_stats_kernel, k=k, stride=s, l_out=l_out)
    y, mean_p, m2_p = pl.pallas_call(
        kernel1,
        out_shape=(jax.ShapeDtypeStruct((n, c_out, l_out), jnp.bfloat16),
                   jax.ShapeDtypeStruct((n, c_out, 1), jnp.float32),
                   jax.ShapeDtypeStruct((n, c_out, 1), jnp.float32)),
        grid_spec=pltpu.PrefetchScalarGridSpec(
            num_scalar_prefetch=0,
            grid=(n,),
            in_specs=[
                pl.BlockSpec((1, s, c_in, l_cols), lambda i: (i, 0, 0, 0)),
                pl.BlockSpec((k, c_out, c_in), lambda i: (0, 0, 0)),
            ],
            out_specs=[
                pl.BlockSpec((1, c_out, l_out), lambda i: (i, 0, 0)),
                pl.BlockSpec((1, c_out, 1), lambda i: (i, 0, 0)),   # per-n partials:
                pl.BlockSpec((1, c_out, 1), lambda i: (i, 0, 0)),   # no shared acc -> no race
            ]),
        compiler_params=_compiler_params(("parallel",), step1_bytes),
        cost_estimate=cost1,
    )(x_t, w_r)

    # ---- merge per-batch-element partials (Chan's formula) & finalize BN affine ----
    mean_n = mean_p[..., 0]                              # (N, C_out)
    m2_n = m2_p[..., 0]
    mean = jnp.mean(mean_n, axis=0)                      # (C_out,)
    m2 = jnp.sum(m2_n, axis=0) + l_out * jnp.sum((mean_n - mean[None, :]) ** 2, axis=0)
    var = m2 / (n * l_out)                               # biased, matches BN training mode
    scale_v = gamma.astype(jnp.float32) * lax.rsqrt(var + BN_EPS)
    shift_v = beta.astype(jnp.float32) - mean * scale_v
    scale = scale_v.reshape(1, c_out, 1)
    shift = shift_v.reshape(1, c_out, 1)

    # ---- pass 2: streaming BN affine + ReLU, writes final NCL output directly ----
    tl2 = _pick_l_tile(l_out)
    step2_bytes = 2 * (c_out * tl2 * 2 + c_out * tl2 * 4) + 2 * c_out * 4
    cost2 = pl.CostEstimate(
        flops=3 * n * c_out * l_out, transcendentals=0,
        bytes_accessed=n * c_out * l_out * (2 + 4) + 2 * c_out * 4)
    out = pl.pallas_call(
        _bn_relu_kernel,
        out_shape=jax.ShapeDtypeStruct((n, c_out, l_out), jnp.float32),
        grid_spec=pltpu.PrefetchScalarGridSpec(
            num_scalar_prefetch=0,
            grid=(n, l_out // tl2),
            in_specs=[
                pl.BlockSpec((1, c_out, tl2), lambda i, j: (i, 0, j)),
                pl.BlockSpec((1, c_out, 1), lambda i, j: (0, 0, 0)),
                pl.BlockSpec((1, c_out, 1), lambda i, j: (0, 0, 0)),
            ],
            out_specs=pl.BlockSpec((1, c_out, tl2), lambda i, j: (i, 0, j))),
        compiler_params=_compiler_params(("parallel", "parallel"), step2_bytes),
        cost_estimate=cost2,
    )(y, scale, shift)

    return out


def _reference(x, weight, bias, gamma, beta, *, stride, padding):
    """Pure-JAX f32 reference: conv1d + bias + batch-stat BN + ReLU."""
    y = lax.conv_general_dilated(
        x, weight, window_strides=(stride,), padding=[(padding, padding)],
        dimension_numbers=("NCH", "OIH", "NCH"))
    y = y + bias[None, :, None]
    mean = jnp.mean(y, axis=(0, 2), keepdims=True)
    var = jnp.mean((y - mean) ** 2, axis=(0, 2), keepdims=True)
    y = (y - mean) * lax.rsqrt(var + BN_EPS)
    y = y * gamma[None, :, None] + beta[None, :, None]
    return jnp.maximum(y, 0.0)


if __name__ == "__main__":
    # Module hyperparameters (small, consistent with Conv1d semantics)
    in_channels, out_channels = 4, 8
    kernel_size, stride, padding = 3, 2, 1
    batch, length = 2, 16

    key = jax.random.PRNGKey(0)
    kx, kw, kb, kg, kbt = jax.random.split(key, 5)

    x = jax.random.normal(kx, (batch, in_channels, length), dtype=jnp.float32)

    fan_in = in_channels * kernel_size
    bound = 1.0 / (fan_in ** 0.5)
    weight = jax.random.uniform(
        kw, (out_channels, in_channels, kernel_size),
        minval=-bound, maxval=bound, dtype=jnp.float32)
    bias = jax.random.uniform(
        kb, (out_channels,), minval=-bound, maxval=bound, dtype=jnp.float32)
    gamma = 1.0 + 0.1 * jax.random.normal(kg, (out_channels,), dtype=jnp.float32)
    beta = 0.1 * jax.random.normal(kbt, (out_channels,), dtype=jnp.float32)

    fwd = jax.jit(functools.partial(down_forward, stride=stride, padding=padding))
    out = jax.block_until_ready(fwd(x, weight, bias, gamma, beta))

    ref = _reference(x, weight, bias, gamma, beta, stride=stride, padding=padding)
    l_out = (length + 2 * padding - kernel_size) // stride + 1
    assert out.shape == ref.shape == (batch, out_channels, l_out)
    # bf16 input operands -> compare against the f32 reference with matching tolerance.
    max_err = float(jnp.max(jnp.abs(out - ref)))
    assert jnp.allclose(out, ref, atol=5e-2, rtol=5e-2), (
        f"mismatch vs reference, max abs err {max_err}")

    print("KERNEL_OK")
</pallas_src>

<mosaic_0001>
module attributes {stable_mosaic.version = 11 : i64} {
  func.func @_conv_stats_kernel(%arg0: i32, %arg1: memref<1x2x4x9xbf16, #tpu.memory_space<vmem>>, %arg2: memref<3x8x4xf32, #tpu.memory_space<vmem>>, %arg3: memref<1x8x8xbf16, #tpu.memory_space<vmem>>, %arg4: memref<1x8x1xf32, #tpu.memory_space<vmem>>, %arg5: memref<1x8x1xf32, #tpu.memory_space<vmem>>) attributes {dimension_semantics = [#tpu.dimension_semantics<parallel>], iteration_bounds = array<i64: 2>, scalar_prefetch = 0 : i64, scratch_operands = 0 : i64, tpu.core_type = #tpu.core_type<tc>, window_params = [{transform_indices = @transform_0, window_bounds = array<i64: 1, 2, 4, 9>}, {pipeline_mode = #tpu.pipeline_mode<synchronous>, transform_indices = @transform_1, window_bounds = array<i64: 3, 8, 4>}, {transform_indices = @transform_2, window_bounds = array<i64: 1, 8, 8>}, {transform_indices = @transform_3, window_bounds = array<i64: 1, 8, 1>}, {transform_indices = @transform_4, window_bounds = array<i64: 1, 8, 1>}]} {
    %c0 = arith.constant 0 : index
    %c0_0 = arith.constant 0 : index
    %c0_1 = arith.constant 0 : index
    %c0_2 = arith.constant 0 : index
    %0 = vector.load %arg1[%c0, %c0_0, %c0_1, %c0_2] : memref<1x2x4x9xbf16, #tpu.memory_space<vmem>>, vector<1x1x4x9xbf16>
    %1 = vector.shape_cast %0 : vector<1x1x4x9xbf16> to vector<4x9xbf16>
    %2 = arith.extf %1 : vector<4x9xbf16> to vector<4x9xf32>
    %c0_3 = arith.constant 0 : index
    %c1 = arith.constant 1 : index
    %c0_4 = arith.constant 0 : index
    %c0_5 = arith.constant 0 : index
    %3 = vector.load %arg1[%c0_3, %c1, %c0_4, %c0_5] : memref<1x2x4x9xbf16, #tpu.memory_space<vmem>>, vector<1x1x4x9xbf16>
    %4 = vector.shape_cast %3 : vector<1x1x4x9xbf16> to vector<4x9xbf16>
    %5 = arith.extf %4 : vector<4x9xbf16> to vector<4x9xf32>
    %cst = arith.constant 0.000000e+00 : f32
    %6 = vector.broadcast %cst : f32 to vector<8x8xf32>
    %7 = vector.extract_strided_slice %2 {offsets = [0, 0], sizes = [4, 8], strides = [1, 1]} : vector<4x9xf32> to vector<4x8xf32>
    %c0_6 = arith.constant 0 : index
    %c0_7 = arith.constant 0 : index
    %c0_8 = arith.constant 0 : index
    %8 = vector.load %arg2[%c0_6, %c0_7, %c0_8] : memref<3x8x4xf32, #tpu.memory_space<vmem>>, vector<1x8x4xf32>
    %9 = vector.shape_cast %8 : vector<1x8x4xf32> to vector<8x4xf32>
    %cst_9 = arith.constant dense<0.000000e+00> : vector<8x8xf32>
    %10 = tpu.matmul %9, %7, %cst_9 {dimension_numbers = #tpu.dot_dimension_numbers<[1], [0], [0], [1], [0, 0, 1, 1], [], []>} : vector<8x4xf32>, vector<4x8xf32>, vector<8x8xf32> -> vector<8x8xf32>
    %11 = arith.addf %6, %10 : vector<8x8xf32>
    %12 = vector.extract_strided_slice %5 {offsets = [0, 0], sizes = [4, 8], strides = [1, 1]} : vector<4x9xf32> to vector<4x8xf32>
    %c1_10 = arith.constant 1 : index
    %c0_11 = arith.constant 0 : index
    %c0_12 = arith.constant 0 : index
    %13 = vector.load %arg2[%c1_10, %c0_11, %c0_12] : memref<3x8x4xf32, #tpu.memory_space<vmem>>, vector<1x8x4xf32>
    %14 = vector.shape_cast %13 : vector<1x8x4xf32> to vector<8x4xf32>
    %cst_13 = arith.constant dense<0.000000e+00> : vector<8x8xf32>
    %15 = tpu.matmul %14, %12, %cst_13 {dimension_numbers = #tpu.dot_dimension_numbers<[1], [0], [0], [1], [0, 0, 1, 1], [], []>} : vector<8x4xf32>, vector<4x8xf32>, vector<8x8xf32> -> vector<8x8xf32>
    %16 = arith.addf %11, %15 : vector<8x8xf32>
    %17 = vector.extract_strided_slice %2 {offsets = [0, 1], sizes = [4, 8], strides = [1, 1]} : vector<4x9xf32> to vector<4x8xf32>
    %c2 = arith.constant 2 : index
    %c0_14 = arith.constant 0 : index
    %c0_15 = arith.constant 0 : index
    %18 = vector.load %arg2[%c2, %c0_14, %c0_15] : memref<3x8x4xf32, #tpu.memory_space<vmem>>, vector<1x8x4xf32>
    %19 = vector.shape_cast %18 : vector<1x8x4xf32> to vector<8x4xf32>
    %cst_16 = arith.constant dense<0.000000e+00> : vector<8x8xf32>
    %20 = tpu.matmul %19, %17, %cst_16 {dimension_numbers = #tpu.dot_dimension_numbers<[1], [0], [0], [1], [0, 0, 1, 1], [], []>} : vector<8x4xf32>, vector<4x8xf32>, vector<8x8xf32> -> vector<8x8xf32>
    %21 = arith.addf %16, %20 : vector<8x8xf32>
    %22 = vector.shape_cast %21 : vector<8x8xf32> to vector<1x8x8xf32>
    %23 = arith.truncf %22 : vector<1x8x8xf32> to vector<1x8x8xbf16>
    %c0_17 = arith.constant 0 : index
    %c0_18 = arith.constant 0 : index
    %c0_19 = arith.constant 0 : index
    %24 = vector.load %arg3[%c0_17, %c0_18, %c0_19] : memref<1x8x8xbf16, #tpu.memory_space<vmem>>, vector<1x8x8xbf16>
    tpu.vector_store %arg3[%c0_17, %c0_18, %c0_19], %23 {strides = array<i32>} : memref<1x8x8xbf16, #tpu.memory_space<vmem>>, vector<1x8x8xbf16>,
    %cst_20 = arith.constant dense<0.000000e+00> : vector<8xf32>
    %25 = vector.multi_reduction <add>, %21, %cst_20 [1] : vector<8x8xf32> to vector<8xf32>
    %26 = vector.shape_cast %25 : vector<8xf32> to vector<8x1xf32>
    %cst_21 = arith.constant 1.250000e-01 : f32
    %27 = vector.broadcast %cst_21 : f32 to vector<8x1xf32>
    %28 = arith.mulf %26, %27 : vector<8x1xf32>
    %29 = vector.broadcast %28 : vector<8x1xf32> to vector<8x8xf32>
    %30 = arith.subf %21, %29 : vector<8x8xf32>
    %31 = vector.shape_cast %28 : vector<8x1xf32> to vector<1x8x1xf32>
    %c0_22 = arith.constant 0 : index
    %c0_23 = arith.constant 0 : index
    %c0_24 = arith.constant 0 : index
    %32 = vector.load %arg4[%c0_22, %c0_23, %c0_24] : memref<1x8x1xf32, #tpu.memory_space<vmem>>, vector<1x8x1xf32>
    tpu.vector_store %arg4[%c0_22, %c0_23, %c0_24], %31 {strides = array<i32>} : memref<1x8x1xf32, #tpu.memory_space<vmem>>, vector<1x8x1xf32>,
    %33 = arith.mulf %30, %30 : vector<8x8xf32>
    %cst_25 = arith.constant dense<0.000000e+00> : vector<8xf32>
    %34 = vector.multi_reduction <add>, %33, %cst_25 [1] : vector<8x8xf32> to vector<8xf32>
    %35 = vector.shape_cast %34 : vector<8xf32> to vector<8x1xf32>
    %36 = vector.shape_cast %35 : vector<8x1xf32> to vector<1x8x1xf32>
    %c0_26 = arith.constant 0 : index
    %c0_27 = arith.constant 0 : index
    %c0_28 = arith.constant 0 : index
    %37 = vector.load %arg5[%c0_26, %c0_27, %c0_28] : memref<1x8x1xf32, #tpu.memory_space<vmem>>, vector<1x8x1xf32>
    tpu.vector_store %arg5[%c0_26, %c0_27, %c0_28], %36 {strides = array<i32>} : memref<1x8x1xf32, #tpu.memory_space<vmem>>, vector<1x8x1xf32>,
    return
  }
  func.func @transform_0(%arg0: i32) -> (i32, i32, i32, i32) {
    %c0_i32 = arith.constant 0 : i32
    %c0_i32_0 = arith.constant 0 : i32
    %c0_i32_1 = arith.constant 0 : i32
    %c0_i32_2 = arith.constant 0 : i32
    return %arg0, %c0_i32, %c0_i32_0, %c0_i32_1 : i32, i32, i32, i32
  }
  func.func @transform_1(%arg0: i32) -> (i32, i32, i32) {
    %c0_i32 = arith.constant 0 : i32
    %c0_i32_0 = arith.constant 0 : i32
    %c0_i32_1 = arith.constant 0 : i32
    %c0_i32_2 = arith.constant 0 : i32
    return %c0_i32, %c0_i32_0, %c0_i32_1 : i32, i32, i32
  }
  func.func @transform_2(%arg0: i32) -> (i32, i32, i32) {
    %c0_i32 = arith.constant 0 : i32
    %c0_i32_0 = arith.constant 0 : i32
    %c0_i32_1 = arith.constant 0 : i32
    return %arg0, %c0_i32, %c0_i32_0 : i32, i32, i32
  }
  func.func @transform_3(%arg0: i32) -> (i32, i32, i32) {
    %c0_i32 = arith.constant 0 : i32
    %c0_i32_0 = arith.constant 0 : i32
    %c0_i32_1 = arith.constant 0 : i32
    return %arg0, %c0_i32, %c0_i32_0 : i32, i32, i32
  }
  func.func @transform_4(%arg0: i32) -> (i32, i32, i32) {
    %c0_i32 = arith.constant 0 : i32
    %c0_i32_0 = arith.constant 0 : i32
    %c0_i32_1 = arith.constant 0 : i32
    return %arg0, %c0_i32, %c0_i32_0 : i32, i32, i32
  }
}

module attributes {stable_mosaic.version = 11 : i64} {
  func.func @_bn_relu_kernel(%arg0: i32, %arg1: i32, %arg2: memref<1x8x8xbf16, #tpu.memory_space<vmem>>, %arg3: memref<1x8x1xf32, #tpu.memory_space<vmem>>, %arg4: memref<1x8x1xf32, #tpu.memory_space<vmem>>, %arg5: memref<1x8x8xf32, #tpu.memory_space<vmem>>) attributes {dimension_semantics = [#tpu.dimension_semantics<parallel>, #tpu.dimension_semantics<parallel>], iteration_bounds = array<i64: 2, 1>, scalar_prefetch = 0 : i64, scratch_operands = 0 : i64, tpu.core_type = #tpu.core_type<tc>, window_params = [{transform_indices = @transform_0, window_bounds = array<i64: 1, 8, 8>}, {pipeline_mode = #tpu.pipeline_mode<synchronous>, transform_indices = @transform_1, window_bounds = array<i64: 1, 8, 1>}, {pipeline_mode = #tpu.pipeline_mode<synchronous>, transform_indices = @transform_2, window_bounds = array<i64: 1, 8, 1>}, {transform_indices = @transform_3, window_bounds = array<i64: 1, 8, 8>}]} {
    %c0 = arith.constant 0 : index
    %c0_0 = arith.constant 0 : index
    %c0_1 = arith.constant 0 : index
    %0 = vector.load %arg2[%c0, %c0_0, %c0_1] : memref<1x8x8xbf16, #tpu.memory_space<vmem>>, vector<1x8x8xbf16>
    %1 = arith.extf %0 : vector<1x8x8xbf16> to vector<1x8x8xf32>
    %c0_2 = arith.constant 0 : index
    %c0_3 = arith.constant 0 : index
    %c0_4 = arith.constant 0 : index
    %2 = vector.load %arg3[%c0_2, %c0_3, %c0_4] : memref<1x8x1xf32, #tpu.memory_space<vmem>>, vector<1x8x1xf32>
    %3 = vector.broadcast %2 : vector<1x8x1xf32> to vector<1x8x8xf32>
    %4 = arith.mulf %1, %3 : vector<1x8x8xf32>
    %c0_5 = arith.constant 0 : index
    %c0_6 = arith.constant 0 : index
    %c0_7 = arith.constant 0 : index
    %5 = vector.load %arg4[%c0_5, %c0_6, %c0_7] : memref<1x8x1xf32, #tpu.memory_space<vmem>>, vector<1x8x1xf32>
    %6 = vector.broadcast %5 : vector<1x8x1xf32> to vector<1x8x8xf32>
    %7 = arith.addf %4, %6 : vector<1x8x8xf32>
    %cst = arith.constant 0.000000e+00 : f32
    %8 = vector.broadcast %cst : f32 to vector<1x8x8xf32>
    %9 = arith.maximumf %7, %8 : vector<1x8x8xf32>
    %c0_8 = arith.constant 0 : index
    %c0_9 = arith.constant 0 : index
    %c0_10 = arith.constant 0 : index
    %10 = vector.load %arg5[%c0_8, %c0_9, %c0_10] : memref<1x8x8xf32, #tpu.memory_space<vmem>>, vector<1x8x8xf32>
    tpu.vector_store %arg5[%c0_8, %c0_9, %c0_10], %9 {strides = array<i32>} : memref<1x8x8xf32, #tpu.memory_space<vmem>>, vector<1x8x8xf32>,
    return
  }
  func.func @transform_0(%arg0: i32, %arg1: i32) -> (i32, i32, i32) {
    %c0_i32 = arith.constant 0 : i32
    %c0_i32_0 = arith.constant 0 : i32
    return %arg0, %c0_i32, %arg1 : i32, i32, i32
  }
  func.func @transform_1(%arg0: i32, %arg1: i32) -> (i32, i32, i32) {
    %c0_i32 = arith.constant 0 : i32
    %c0_i32_0 = arith.constant 0 : i32
    %c0_i32_1 = arith.constant 0 : i32
    %c0_i32_2 = arith.constant 0 : i32
    return %c0_i32, %c0_i32_0, %c0_i32_1 : i32, i32, i32
  }
  func.func @transform_2(%arg0: i32, %arg1: i32) -> (i32, i32, i32) {
    %c0_i32 = arith.constant 0 : i32
    %c0_i32_0 = arith.constant 0 : i32
    %c0_i32_1 = arith.constant 0 : i32
    %c0_i32_2 = arith.constant 0 : i32
    return %c0_i32, %c0_i32_0, %c0_i32_1 : i32, i32, i32
  }
  func.func @transform_3(%arg0: i32, %arg1: i32) -> (i32, i32, i32) {
    %c0_i32 = arith.constant 0 : i32
    %c0_i32_0 = arith.constant 0 : i32
    return %arg0, %c0_i32, %arg1 : i32, i32, i32
  }
}

</mosaic_0001>

<llo_original>
// kernel: down_forward.3
$region0: #{down_forward.3}
  #allocation0 [shape = 'u32[]', space=smem, size = 0x4, offset = 0x4, fixed_abs, tag = 'smem constant byte address 0x4 - core index']
  #allocation1 [shape = 'u32[72,128]{1,0:T(1,128)}', space=vmem, size = 0x9000, scoped, tag = 'internal scratch']
  %s0 = inlined_call_operand.vmem [shape: bf16[2,8,8], index: 0, kind: input, shape index: {}]
  %s1 = inlined_call_operand.vmem [shape: f32[1,8,1], index: 1, kind: input, shape index: {}]
  %s2 = inlined_call_operand.vmem [shape: f32[1,8,1], index: 2, kind: input, shape index: {}]
  %s3 = inlined_call_operand.hbm [shape: f32[2,8,8], index: 3, kind: output, shape index: {}]
  %s4 = sld [smem:[#allocation0]]
  $region45: #{down_forward.3} parent=0
    _
  %s6 = ssub.s32 1, %s4
  %s7 = scalar_select 0, %s6, %s4
  $region1: #{down_forward.3} parent=0
    #allocation2 [shape = 'u8[8192]{0}', space=vmem, size = 0x2000, scoped, tag = 'output window, operand 0']
    #allocation3 [shape = 's32[2]{0}', space=sflag, size = 0x8, scoped, tag = 'scoped memory for down_forward.3']
    %8 = vsyncpa [#allocation3], 0
    %s9 = scalar_lea.sflag [#allocation3], 1
    %10 = vsyncpa %s9, 0
    loop: start=0, step=1, limit=4
    $region2: #{down_forward.3} parent=1 // loop_pre_header
      _
    $region3: #{down_forward.3} parent=1 // loop_header
      %s12 = sphi 0, %s16
      %p13 = scmp.ge.s32.totalorder %s12, 4
      %s19 = sphi 0, %s31
      %s20 = sphi 0, %s27
      %s21 = sphi 0, %s19
      %s22 = sphi 0, %s20
      %s23 = sphi 0, %s21
      %s24 = sphi 0, %s22
      %s36 = sphi 0, %s38
      %s39 = sphi 0, %s36
      %s40 = sphi 0, %s39
      %s56 = sphi 0, %s40
      %s60 = sphi 0, %s60
      %s62 = sphi 0, %s60
      %s63 = sphi 0, %s62
      %s77 = sphi 0, %s63
      %s81 = sphi 0, %s81
      %s83 = sphi 0, %s81
      %s84 = sphi 0, %s83
      %s98 = sphi 0, %s84
      %s106 = sphi 0, %s108
      %s109 = sphi 0, %s106
      %s110 = sphi 0, %s109
      %s126 = sphi 0, %s110
    $region4: #{down_forward.3} parent=1 // loop_header_branch
      %15 = sbr.rel (%p13) target = $region8
    $region5: #{down_forward.3} parent=1 // loop_body
      %s17 = ssub.s32 %s12, 1
      %s18 = ssub.s32 %s12, 2
      %s25 = sadd.s32 1, %s20
      %p26 = scmp.ge.s32.totalorder %s25, 1
      %s27 = scalar_select %p26, 0, %s25
      %s28 = sadd.s32 1, %s19
      %s29 = scalar_select %p26, %s28, %s19
      %p30 = scmp.ge.s32.totalorder %s29, 2
      %s31 = scalar_select %p30, 0, %s29
      %s32 = ssub.s32 %s19, %s31
      %s33 = ssub.s32 %s20, %s27
      %s34 = sor.u32 %s32, %s33
      %p35 = scmp.eq.s32.totalorder %s34, 0
      %s37 = sadd.s32 %s36, 1
      %s38 = scalar_select %p35, %s36, %s37
      %p41 = pneg %p35
      %p42 = scmp.eq.s32.totalorder %s12, 1
      %p43 = por %p41, %p42
      %p44 = scmp.ne.s32.totalorder %s36, %s39
      %p45 = scmp.eq.s32.totalorder %s12, 0
      %p46 = por %p44, %p45
      %p47 = scmp.ne.s32.totalorder %s36, %s39
      %p48 = scmp.eq.s32.totalorder %s17, 1
      %p49 = por %p47, %p48
      %p50 = scmp.ne.s32.totalorder %s39, %s40
      %p51 = scmp.eq.s32.totalorder %s17, 0
      %p52 = por %p50, %p51
      %p53 = scmp.ne.s32.totalorder %s39, %s40
      %p54 = scmp.eq.s32.totalorder %s18, 1
      %p55 = por %p53, %p54
      %p57 = scmp.ne.s32.totalorder %s40, %s56
      %p58 = scmp.eq.s32.totalorder %s18, 0
      %p59 = por %p57, %p58
      %s61 = sadd.s32 %s60, 1
      %p64 = scmp.eq.s32.totalorder %s12, 1
      %p65 = scmp.ne.s32.totalorder %s60, %s62
      %p66 = scmp.eq.s32.totalorder %s12, 0
      %p67 = por %p65, %p66
      %p68 = scmp.ne.s32.totalorder %s60, %s62
      %p69 = scmp.eq.s32.totalorder %s17, 1
      %p70 = por %p68, %p69
      %p71 = scmp.ne.s32.totalorder %s62, %s63
      %p72 = scmp.eq.s32.totalorder %s17, 0
      %p73 = por %p71, %p72
      %p74 = scmp.ne.s32.totalorder %s62, %s63
      %p75 = scmp.eq.s32.totalorder %s18, 1
      %p76 = por %p74, %p75
      %p78 = scmp.ne.s32.totalorder %s63, %s77
      %p79 = scmp.eq.s32.totalorder %s18, 0
      %p80 = por %p78, %p79
      %s82 = sadd.s32 %s81, 1
      %p85 = scmp.eq.s32.totalorder %s12, 1
      %p86 = scmp.ne.s32.totalorder %s81, %s83
      %p87 = scmp.eq.s32.totalorder %s12, 0
      %p88 = por %p86, %p87
      %p89 = scmp.ne.s32.totalorder %s81, %s83
      %p90 = scmp.eq.s32.totalorder %s17, 1
      %p91 = por %p89, %p90
      %p92 = scmp.ne.s32.totalorder %s83, %s84
      %p93 = scmp.eq.s32.totalorder %s17, 0
      %p94 = por %p92, %p93
      %p95 = scmp.ne.s32.totalorder %s83, %s84
      %p96 = scmp.eq.s32.totalorder %s18, 1
      %p97 = por %p95, %p96
      %p99 = scmp.ne.s32.totalorder %s84, %s98
      %p100 = scmp.eq.s32.totalorder %s18, 0
      %p101 = por %p99, %p100
      %s102 = ssub.s32 %s19, %s31
      %s103 = ssub.s32 %s20, %s27
      %s104 = sor.u32 %s102, %s103
      %p105 = scmp.eq.s32.totalorder %s104, 0
      %s107 = sadd.s32 %s106, 1
      %s108 = scalar_select %p105, %s106, %s107
      %p111 = pneg %p105
      %p112 = scmp.eq.s32.totalorder %s12, 1
      %p113 = por %p111, %p112
      %p114 = scmp.ne.s32.totalorder %s106, %s109
      %p115 = scmp.eq.s32.totalorder %s12, 0
      %p116 = por %p114, %p115
      %p117 = scmp.ne.s32.totalorder %s106, %s109
      %p118 = scmp.eq.s32.totalorder %s17, 1
      %p119 = por %p117, %p118
      %p120 = scmp.ne.s32.totalorder %s109, %s110
      %p121 = scmp.eq.s32.totalorder %s17, 0
      %p122 = por %p120, %p121
      %p123 = scmp.ne.s32.totalorder %s109, %s110
      %p124 = scmp.eq.s32.totalorder %s18, 1
      %p125 = por %p123, %p124
      %p127 = scmp.ne.s32.totalorder %s110, %s126
      %p128 = scmp.eq.s32.totalorder %s18, 0
      %p129 = por %p127, %p128
      %p130 = scmp.le.s32.totalorder 1, %s12
      %p131 = scmp.lt.s32.totalorder %s12, 3
      %p132 = pnand %p130, %p131
      %p133 = pneg %p132
      // Predicated region
      $region9: #{down_forward.3} parent=5 // pred_check
        _
      $region10: #{down_forward.3} parent=5 // pred_check_branch
        %135 = sbr.rel (%p132) target = $region12
      $region11: #{down_forward.3} parent=5 // pred_region
        %s136 = ssub.s32 %s12, 1
        // Predicated region
        $region13: #{down_forward.3} parent=11 // pred_check
          %p137 = pneg %p73
        $region14: #{down_forward.3} parent=11 // pred_check_branch
          %139 = sbr.rel (%p137) target = $region16
        $region15: #{down_forward.3} parent=11 // pred_region
          _
        $region16: #{down_forward.3} parent=11 // pred_fallthru
          _
        // Predicated region
        $region17: #{down_forward.3} parent=11 // pred_check
          %p140 = pneg %p94
        $region18: #{down_forward.3} parent=11 // pred_check_branch
          %142 = sbr.rel (%p140) target = $region20
        $region19: #{down_forward.3} parent=11 // pred_region
          _
        $region20: #{down_forward.3} parent=11 // pred_fallthru
          _
      $region12: #{down_forward.3} parent=5 // pred_fallthru
        _
      %p143 = scmp.lt.s32.totalorder %s12, 2
      // Predicated region
      $region21: #{down_forward.3} parent=5 // pred_check
        %p144 = pneg %p143
      $region22: #{down_forward.3} parent=5 // pred_check_branch
        %146 = sbr.rel (%p144) target = $region24
      $region23: #{down_forward.3} parent=5 // pred_region
        // Predicated region
        $region25: #{down_forward.3} parent=23 // pred_check
          %p147 = pneg %p46
        $region26: #{down_forward.3} parent=23 // pred_check_branch
          %149 = sbr.rel (%p147) target = $region28
        $region27: #{down_forward.3} parent=23 // pred_region
          %p150 = scmp.lt.s32.totalorder %s19, 1
          %s151 = scalar_select %p150, %s19, 1
          %p152 = scmp.lt.s32.totalorder %s20, 0
          %s153 = scalar_select %p152, %s20, 0
          %s154 = sadd.s32 %s153, %s151
          %s155 = smul.addr %s154, 4
          %s156 = scalar_lea.vmem %s0, %s155
        $region28: #{down_forward.3} parent=23 // pred_fallthru
          _
      $region24: #{down_forward.3} parent=5 // pred_fallthru
        _
      %p157 = scmp.le.s32.totalorder 1, %s12
      %p158 = scmp.lt.s32.totalorder %s12, 3
      %p159 = pnand %p157, %p158
      %p160 = pneg %p159
      // Predicated region
      $region29: #{down_forward.3} parent=5 // pred_check
        _
      $region30: #{down_forward.3} parent=5 // pred_check_branch
        %162 = sbr.rel (%p159) target = $region32
      $region31: #{down_forward.3} parent=5 // pred_region
        %s163 = ssub.s32 %s12, 1
        %p164 = scmp.lt.s32.totalorder %s21, 1
        %s165 = scalar_select %p164, %s21, 1
        %p166 = scmp.lt.s32.totalorder %s22, 0
        %s167 = scalar_select %p166, %s22, 0
        %s168 = sadd.s32 %s167, %s165
        %s169 = smul.addr %s168, 4
        %s170 = scalar_lea.vmem %s0, %s169
        %p171 = pneg %p52
        %p172 = pneg %p49
        %p173 = pneg %p73
        %p174 = pneg %p70
        %p175 = pneg %p94
        %p176 = pneg %p91
        %p177 = pneg %p122
        %p178 = pneg %p119
        %s179 = sand.u32 %s109, 1
        %s180 = scalar_lea.sflag [#allocation3], %s179
        %s181 = sand.u32 %s109, 1
        %s182 = smul.addr %s181, 8
        %s183 = scalar_lea.vmem [#allocation2], %s182
        %p184 = scmp.lt.s32.totalorder %s21, 1
        %s185 = scalar_select %p184, %s21, 1
        %p186 = scmp.lt.s32.totalorder %s22, 0
        %s187 = scalar_select %p186, %s22, 0
        %s188 = sadd.s32 %s187, %s185
        %s189 = smul.addr %s188, 4
        %s190 = scalar_lea.vmem %s0, %s189
        %v191 = vld [vmem:[%s190] sm:$0xf]
        %v192 = vunpack.c.l.bf16 %v191
        %v193 = vld [vmem:[%s1] sm:$0xff]
        %195 = vset.pattern.permute.xlu0 0
        %196 = vperm.xlu0 %195, %v193
        %v197 = vpop.permute.xlu0 %196
        %v199 = vmul.f32 %v192, %v197
        %v200 = vld [vmem:[%s2] sm:$0xff]
        %202 = vset.pattern.permute.xlu0 0
        %203 = vperm.xlu0 %202, %v200
        %v204 = vpop.permute.xlu0 %203
        %v206 = vadd.f32 %v199, %v204
        %v207 = vmax.f32 %v206, 0.0
        %vm208 = vcmask 64512
        %209 = vst.msk [vmem:[%s183] sm:$0xff] %vm208, %v207
        %s210 = sand.u32 %s109, 1
        %s211 = scalar_lea.sflag [#allocation3], %s210
        %s212 = sand.u32 %s109, 1
        %s213 = smul.addr %s212, 8
        %s214 = scalar_lea.vmem [#allocation2], %s213
        // Predicated region
        $region33: #{down_forward.3} parent=31 // pred_check
          %p215 = pneg %p119
        $region34: #{down_forward.3} parent=31 // pred_check_branch
          %217 = sbr.rel (%p215) target = $region36
        $region35: #{down_forward.3} parent=31 // pred_region
          %219 = vsyncadd %s211, 0
          %s220 = sadd.s32 %s22, %s21
          %s221 = smul.addr %s220, 8
          %s222 = scalar_lea.hbm %s3, %s221
          %s224 = sshll.u32 %s214, 4
          %s225 = int_to_ptr.vmem [resolvable:$true] %s224
          %s226 = sshll.u32 %s222, 4
          %s227 = int_to_ptr.hbm [resolvable:$true] %s226
          %229 = dma.vmem_to_hbm [thread:$0]  %s225, 128, %s227, %s211
        $region36: #{down_forward.3} parent=31 // pred_fallthru
          _
      $region32: #{down_forward.3} parent=5 // pred_fallthru
        _
      %p230 = scmp.le.s32.totalorder 2, %s12
      // Predicated region
      $region37: #{down_forward.3} parent=5 // pred_check
        %p231 = pneg %p230
      $region38: #{down_forward.3} parent=5 // pred_check_branch
        %233 = sbr.rel (%p231) target = $region40
      $region39: #{down_forward.3} parent=5 // pred_region
        %s234 = ssub.s32 %s12, 2
        // Predicated region
        $region41: #{down_forward.3} parent=39 // pred_check
          %p235 = pneg %p125
        $region42: #{down_forward.3} parent=39 // pred_check_branch
          %237 = sbr.rel (%p235) target = $region44
        $region43: #{down_forward.3} parent=39 // pred_region
          %s238 = sand.u32 %s110, 1
          %s239 = scalar_lea.sflag [#allocation3], %s238
          %s240 = sand.u32 %s110, 1
          %s241 = smul.addr %s240, 8
          %s242 = scalar_lea.vmem [#allocation2], %s241
          %244 = dma.done %s239, 128
        $region44: #{down_forward.3} parent=39 // pred_fallthru
          _
      $region40: #{down_forward.3} parent=5 // pred_fallthru
        _
    $region6: #{down_forward.3} parent=1 // loop_footer
      %s16 = sadd.s32 1, %s12
    $region7: #{down_forward.3} parent=1 // loop_footer_branch
      %11 = sbr.rel target = $region3
    $region8: #{down_forward.3} parent=1 // loop_exit
      _
    %245 = vsyncpa [#allocation3], 1
    %s246 = scalar_lea.sflag [#allocation3], 1
    %247 = vsyncpa %s246, 1

// kernel: down_forward.2
$region0: #{down_forward.2}
  #allocation0 [shape = 'u32[]', space=smem, size = 0x4, offset = 0x4, fixed_abs, tag = 'smem constant byte address 0x4 - core index']
  #allocation1 [shape = 'u32[72,128]{1,0:T(1,128)}', space=vmem, size = 0x9000, scoped, tag = 'internal scratch']
  %s0 = inlined_call_operand.vmem [shape: bf16[2,2,4,9], index: 0, kind: input, shape index: {}]
  %s1 = inlined_call_operand.vmem [shape: f32[3,8,4], index: 1, kind: input, shape index: {}]
  %s2 = inlined_call_operand.vmem [shape: bf16[2,8,8], index: 2, kind: output, shape index: {0}]
  %s3 = inlined_call_operand.vmem [shape: f32[2,8,1], index: 3, kind: output, shape index: {1}]
  %s4 = inlined_call_operand.vmem [shape: f32[2,8,1], index: 4, kind: output, shape index: {2}]
  %5 = xla_tuple %s2, %s3, %s4
  %s6 = sld [smem:[#allocation0]]
  $region57: #{down_forward.2} parent=0
    _
  %s8 = ssub.s32 1, %s6
  %s9 = scalar_select 0, %s8, %s6
  loop: start=0, step=1, limit=4
  $region2: #{down_forward.2} parent=0 // loop_pre_header
    _
  $region3: #{down_forward.2} parent=0 // loop_header
    %s11 = sphi 0, %s15
    %p12 = scmp.ge.s32.totalorder %s11, 4
    %s21 = sphi 0, %s23
    %s24 = sphi 0, %s21
    %s25 = sphi 0, %s24
    %s41 = sphi 0, %s25
    %s45 = sphi 0, %s45
    %s47 = sphi 0, %s45
    %s48 = sphi 0, %s47
    %s62 = sphi 0, %s48
    %s68 = sphi 0, %s70
    %s71 = sphi 0, %s68
    %s72 = sphi 0, %s71
    %s88 = sphi 0, %s72
    %s94 = sphi 0, %s96
    %s97 = sphi 0, %s94
    %s98 = sphi 0, %s97
    %s114 = sphi 0, %s98
    %s120 = sphi 0, %s122
    %s123 = sphi 0, %s120
    %s124 = sphi 0, %s123
    %s140 = sphi 0, %s124
  $region4: #{down_forward.2} parent=0 // loop_header_branch
    %14 = sbr.rel (%p12) target = $region8
  $region5: #{down_forward.2} parent=0 // loop_body
    %s16 = ssub.s32 %s11, 1
    %s17 = ssub.s32 %s11, 2
    %s18 = sadd.s32 %s11, 1
    %s19 = ssub.s32 %s11, %s18
    %p20 = scmp.eq.s32.totalorder %s19, 0
    %s22 = sadd.s32 %s21, 1
    %s23 = scalar_select %p20, %s21, %s22
    %p26 = pneg %p20
    %p27 = scmp.eq.s32.totalorder %s11, 1
    %p28 = por %p26, %p27
    %p29 = scmp.ne.s32.totalorder %s21, %s24
    %p30 = scmp.eq.s32.totalorder %s11, 0
    %p31 = por %p29, %p30
    %p32 = scmp.ne.s32.totalorder %s21, %s24
    %p33 = scmp.eq.s32.totalorder %s16, 1
    %p34 = por %p32, %p33
    %p35 = scmp.ne.s32.totalorder %s24, %s25
    %p36 = scmp.eq.s32.totalorder %s16, 0
    %p37 = por %p35, %p36
    %p38 = scmp.ne.s32.totalorder %s24, %s25
    %p39 = scmp.eq.s32.totalorder %s17, 1
    %p40 = por %p38, %p39
    %p42 = scmp.ne.s32.totalorder %s25, %s41
    %p43 = scmp.eq.s32.totalorder %s17, 0
    %p44 = por %p42, %p43
    %s46 = sadd.s32 %s45, 1
    %p49 = scmp.eq.s32.totalorder %s11, 1
    %p50 = scmp.ne.s32.totalorder %s45, %s47
    %p51 = scmp.eq.s32.totalorder %s11, 0
    %p52 = por %p50, %p51
    %p53 = scmp.ne.s32.totalorder %s45, %s47
    %p54 = scmp.eq.s32.totalorder %s16, 1
    %p55 = por %p53, %p54
    %p56 = scmp.ne.s32.totalorder %s47, %s48
    %p57 = scmp.eq.s32.totalorder %s16, 0
    %p58 = por %p56, %p57
    %p59 = scmp.ne.s32.totalorder %s47, %s48
    %p60 = scmp.eq.s32.totalorder %s17, 1
    %p61 = por %p59, %p60
    %p63 = scmp.ne.s32.totalorder %s48, %s62
    %p64 = scmp.eq.s32.totalorder %s17, 0
    %p65 = por %p63, %p64
    %s66 = ssub.s32 %s11, %s18
    %p67 = scmp.eq.s32.totalorder %s66, 0
    %s69 = sadd.s32 %s68, 1
    %s70 = scalar_select %p67, %s68, %s69
    %p73 = pneg %p67
    %p74 = scmp.eq.s32.totalorder %s11, 1
    %p75 = por %p73, %p74
    %p76 = scmp.ne.s32.totalorder %s68, %s71
    %p77 = scmp.eq.s32.totalorder %s11, 0
    %p78 = por %p76, %p77
    %p79 = scmp.ne.s32.totalorder %s68, %s71
    %p80 = scmp.eq.s32.totalorder %s16, 1
    %p81 = por %p79, %p80
    %p82 = scmp.ne.s32.totalorder %s71, %s72
    %p83 = scmp.eq.s32.totalorder %s16, 0
    %p84 = por %p82, %p83
    %p85 = scmp.ne.s32.totalorder %s71, %s72
    %p86 = scmp.eq.s32.totalorder %s17, 1
    %p87 = por %p85, %p86
    %p89 = scmp.ne.s32.totalorder %s72, %s88
    %p90 = scmp.eq.s32.totalorder %s17, 0
    %p91 = por %p89, %p90
    %s92 = ssub.s32 %s11, %s18
    %p93 = scmp.eq.s32.totalorder %s92, 0
    %s95 = sadd.s32 %s94, 1
    %s96 = scalar_select %p93, %s94, %s95
    %p99 = pneg %p93
    %p100 = scmp.eq.s32.totalorder %s11, 1
    %p101 = por %p99, %p100
    %p102 = scmp.ne.s32.totalorder %s94, %s97
    %p103 = scmp.eq.s32.totalorder %s11, 0
    %p104 = por %p102, %p103
    %p105 = scmp.ne.s32.totalorder %s94, %s97
    %p106 = scmp.eq.s32.totalorder %s16, 1
    %p107 = por %p105, %p106
    %p108 = scmp.ne.s32.totalorder %s97, %s98
    %p109 = scmp.eq.s32.totalorder %s16, 0
    %p110 = por %p108, %p109
    %p111 = scmp.ne.s32.totalorder %s97, %s98
    %p112 = scmp.eq.s32.totalorder %s17, 1
    %p113 = por %p111, %p112
    %p115 = scmp.ne.s32.totalorder %s98, %s114
    %p116 = scmp.eq.s32.totalorder %s17, 0
    %p117 = por %p115, %p116
    %s118 = ssub.s32 %s11, %s18
    %p119 = scmp.eq.s32.totalorder %s118, 0
    %s121 = sadd.s32 %s120, 1
    %s122 = scalar_select %p119, %s120, %s121
    %p125 = pneg %p119
    %p126 = scmp.eq.s32.totalorder %s11, 1
    %p127 = por %p125, %p126
    %p128 = scmp.ne.s32.totalorder %s120, %s123
    %p129 = scmp.eq.s32.totalorder %s11, 0
    %p130 = por %p128, %p129
    %p131 = scmp.ne.s32.totalorder %s120, %s123
    %p132 = scmp.eq.s32.totalorder %s16, 1
    %p133 = por %p131, %p132
    %p134 = scmp.ne.s32.totalorder %s123, %s124
    %p135 = scmp.eq.s32.totalorder %s16, 0
    %p136 = por %p134, %p135
    %p137 = scmp.ne.s32.totalorder %s123, %s124
    %p138 = scmp.eq.s32.totalorder %s17, 1
    %p139 = por %p137, %p138
    %p141 = scmp.ne.s32.totalorder %s124, %s140
    %p142 = scmp.eq.s32.totalorder %s17, 0
    %p143 = por %p141, %p142
    %p144 = scmp.le.s32.totalorder 1, %s11
    %p145 = scmp.lt.s32.totalorder %s11, 3
    %p146 = pnand %p144, %p145
    %p147 = pneg %p146
    // Predicated region
    $region9: #{down_forward.2} parent=5 // pred_check
      _
    $region10: #{down_forward.2} parent=5 // pred_check_branch
      %149 = sbr.rel (%p146) target = $region12
    $region11: #{down_forward.2} parent=5 // pred_region
      %s150 = ssub.s32 %s11, 1
      // Predicated region
      $region13: #{down_forward.2} parent=11 // pred_check
        %p151 = pneg %p58
      $region14: #{down_forward.2} parent=11 // pred_check_branch
        %153 = sbr.rel (%p151) target = $region16
      $region15: #{down_forward.2} parent=11 // pred_region
        _
      $region16: #{down_forward.2} parent=11 // pred_fallthru
        _
    $region12: #{down_forward.2} parent=5 // pred_fallthru
      _
    %p154 = scmp.lt.s32.totalorder %s11, 2
    // Predicated region
    $region17: #{down_forward.2} parent=5 // pred_check
      %p155 = pneg %p154
    $region18: #{down_forward.2} parent=5 // pred_check_branch
      %157 = sbr.rel (%p155) target = $region20
    $region19: #{down_forward.2} parent=5 // pred_region
      // Predicated region
      $region21: #{down_forward.2} parent=19 // pred_check
        %p158 = pneg %p31
      $region22: #{down_forward.2} parent=19 // pred_check_branch
        %160 = sbr.rel (%p158) target = $region24
      $region23: #{down_forward.2} parent=19 // pred_region
        %p161 = scmp.lt.s32.totalorder %s11, 1
        %s162 = scalar_select %p161, %s11, 1
        %s163 = smul.addr %s162, 2
        %s164 = smul.addr %s163, 2
        %s165 = scalar_lea.vmem %s0, %s164
      $region24: #{down_forward.2} parent=19 // pred_fallthru
        _
    $region20: #{down_forward.2} parent=5 // pred_fallthru
      _
    %p166 = scmp.le.s32.totalorder 1, %s11
    %p167 = scmp.lt.s32.totalorder %s11, 3
    %p168 = pnand %p166, %p167
    %p169 = pneg %p168
    // Predicated region
    $region25: #{down_forward.2} parent=5 // pred_check
      _
    $region26: #{down_forward.2} parent=5 // pred_check_branch
      %171 = sbr.rel (%p168) target = $region28
    $region27: #{down_forward.2} parent=5 // pred_region
      %s172 = ssub.s32 %s11, 1
      %p173 = scmp.lt.s32.totalorder %s16, 1
      %s174 = scalar_select %p173, %s16, 1
      %s175 = smul.addr %s174, 2
      %s176 = smul.addr %s175, 2
      %s177 = scalar_lea.vmem %s0, %s176
      %p178 = pneg %p37
      %p179 = pneg %p34
      %p180 = pneg %p58
      %p181 = pneg %p55
      %p182 = pneg %p84
      %p183 = pneg %p81
      %p184 = scmp.lt.s32.totalorder %s16, 1
      %s185 = scalar_select %p184, %s16, 1
      %s186 = smul.addr %s185, 4
      %s187 = scalar_lea.vmem %s2, %s186
      %p188 = pneg %p110
      %p189 = pneg %p107
      %p190 = scmp.lt.s32.totalorder %s16, 1
      %s191 = scalar_select %p190, %s16, 1
      %s192 = smul.addr %s191, 8
      %s193 = scalar_lea.vmem %s3, %s192
      %p194 = pneg %p136
      %p195 = pneg %p133
      %p196 = scmp.lt.s32.totalorder %s16, 1
      %s197 = scalar_select %p196, %s16, 1
      %s198 = smul.addr %s197, 8
      %s199 = scalar_lea.vmem %s4, %s198
      %p200 = scmp.lt.s32.totalorder %s16, 1
      %s201 = scalar_select %p200, %s16, 1
      %s202 = smul.addr %s201, 2
      %s203 = smul.addr %s202, 2
      %s204 = scalar_lea.vmem %s0, %s203
      %p205 = scmp.lt.s32.totalorder %s16, 1
      %s206 = scalar_select %p205, %s16, 1
      %s207 = smul.addr %s206, 4
      %s208 = scalar_lea.vmem %s2, %s207
      %p209 = scmp.lt.s32.totalorder %s16, 1
      %s210 = scalar_select %p209, %s16, 1
      %s211 = smul.addr %s210, 8
      %s212 = scalar_lea.vmem %s3, %s211
      %p213 = scmp.lt.s32.totalorder %s16, 1
      %s214 = scalar_select %p213, %s16, 1
      %s215 = smul.addr %s214, 8
      %s216 = scalar_lea.vmem %s4, %s215
      %v217 = vld [vmem:[%s204] sm:$0x3]
      %v218 = vunpack.c.l.bf16 %v217
      %s219 = scalar_lea.vmem %s204, 2
      %v220 = vld [vmem:[%s219] sm:$0x3]
      %v221 = vunpack.c.l.bf16 %v220
      %v222 = vld [vmem:[%s1] sm:$0xff]
      %s223 = scalar_lea.vmem %s1, 8
      %v224 = vld [vmem:[%s223] sm:$0xff]
      %vm225 = vcmask 31744
      %v227 = vsel %vm225, %v224, 0
      %vm229 = vcmask 1043456
      %v231 = vsel %vm229, %v221, 0
      %233 = vmatpush.msra.mxu0 0.0
      %234 = vmatpush.msra.mxu0 0.0
      %235 = vmatpush.msra.mxu0 0.0
      %236 = vmatpush.msra.mxu0 0.0
      %237 = vmatpush.msra.mxu0 0.0
      %238 = vmatpush.msra.mxu0 0.0
      %239 = vmatpush.msra.mxu0 0.0
      %240 = vmatpush.msra.mxu0 0.0
      %241 = vmatpush.msra.mxu0 0.0
      %242 = vmatpush.msra.mxu0 0.0
      %243 = vmatpush.msra.mxu0 0.0
      %244 = vmatpush.msra.mxu0 0.0
      %245 = vmatpush.msra.mxu0 0.0
      %246 = vmatpush.msra.mxu0 0.0
      %247 = vmatpush.msra.mxu0 0.0
      %248 = vmatpush.msra.mxu0 %v231
      %249 = vmatmul.f32.gmra.mxu0 %v227
      %v250 = vpop.f32.mrf.mxu0
      %v251 = vadd.f32 0.0, %v250
      %252 = vdwg.mxu0
      %v254 = vsel %vm225, %v222, 0
      %v257 = vsel %vm229, %v218, 0
      %259 = vmatpush.msra.mxu0 0.0
      %260 = vmatpush.msra.mxu0 0.0
      %261 = vmatpush.msra.mxu0 0.0
      %262 = vmatpush.msra.mxu0 0.0
      %263 = vmatpush.msra.mxu0 0.0
      %264 = vmatpush.msra.mxu0 0.0
      %265 = vmatpush.msra.mxu0 0.0
      %266 = vmatpush.msra.mxu0 0.0
      %267 = vmatpush.msra.mxu0 0.0
      %268 = vmatpush.msra.mxu0 0.0
      %269 = vmatpush.msra.mxu0 0.0
      %270 = vmatpush.msra.mxu0 0.0
      %271 = vmatpush.msra.mxu0 0.0
      %272 = vmatpush.msra.mxu0 0.0
      %273 = vmatpush.msra.mxu0 0.0
      %274 = vmatpush.msra.mxu0 %v257
      %275 = vmatmul.f32.gmra.mxu0 %v254
      %v276 = vpop.f32.mrf.mxu0
      %v277 = vadd.f32 %v251, %v276
      %278 = vdwg.mxu0
      %s279 = scalar_lea.vmem %s1, 16
      %v280 = vld [vmem:[%s279] sm:$0xff]
      %281 = vst [vmem:[#allocation1] ss:$2 sm:$0xff] %v218
      %v282 = vld.sshfl [vmem:[#allocation1] sm:$0xff pattern:$0x75316420]
      %283 = vrot.lane.b32.xlu0 %v282, 127
      %v284 = vpop.permute.xlu0 %283
      %v286 = vsel %vm225, %v280, 0
      %v288 = vsel %vm229, %v284, 0
      %290 = vmatpush.msra.mxu0 0.0
      %291 = vmatpush.msra.mxu0 0.0
      %292 = vmatpush.msra.mxu0 0.0
      %293 = vmatpush.msra.mxu0 0.0
      %294 = vmatpush.msra.mxu0 0.0
      %295 = vmatpush.msra.mxu0 0.0
      %296 = vmatpush.msra.mxu0 0.0
      %297 = vmatpush.msra.mxu0 0.0
      %298 = vmatpush.msra.mxu0 0.0
      %299 = vmatpush.msra.mxu0 0.0
      %300 = vmatpush.msra.mxu0 0.0
      %301 = vmatpush.msra.mxu0 0.0
      %302 = vmatpush.msra.mxu0 0.0
      %303 = vmatpush.msra.mxu0 0.0
      %304 = vmatpush.msra.mxu0 0.0
      %305 = vmatpush.msra.mxu0 %v288
      %306 = vmatmul.f32.gmra.mxu0 %v286
      %v307 = vpop.f32.mrf.mxu0
      %v308 = vadd.f32 0.0, %v307
      %309 = vdwg.mxu0
      %v310 = vadd.f32 %v277, %v308
      %v311 = vpack.c.bf16 %v310, %v310
      %vm312 = vcmask 60416
      %313 = vst.msk [vmem:[%s208] sm:$0xf] %vm312, %v311
      %vm314 = vcmask 64512
      %v315 = vsel %vm314, %v310, 0.0
      %316 = vadd.xlane.f32.xlu0 %v315
      %v317 = vpop.xlane.xlu0 %316
      %v318 = vmul.f32 %v317, 0.125
      %v319 = vsub.f32 %v310, %v318
      %vm320 = vcmask 7168
      %321 = vst.msk [vmem:[%s212] sm:$0xff] %vm320, %v318
      %v322 = vmul.f32 %v319, %v319
      %v323 = vsel %vm314, %v322, 0.0
      %324 = vadd.xlane.f32.xlu0 %v323
      %v325 = vpop.xlane.xlu0 %324
      %326 = vst.msk [vmem:[%s216] sm:$0xff] %vm320, %v325
      %p327 = scmp.lt.s32.totalorder %s16, 1
      %s328 = scalar_select %p327, %s16, 1
      %s329 = smul.addr %s328, 4
      %s330 = scalar_lea.vmem %s2, %s329
      %p331 = scmp.lt.s32.totalorder %s16, 1
      %s332 = scalar_select %p331, %s16, 1
      %s333 = smul.addr %s332, 8
      %s334 = scalar_lea.vmem %s3, %s333
      %p335 = scmp.lt.s32.totalorder %s16, 1
      %s336 = scalar_select %p335, %s16, 1
      %s337 = smul.addr %s336, 8
      %s338 = scalar_lea.vmem %s4, %s337
      // Predicated region
      $region29: #{down_forward.2} parent=27 // pred_check
        %p339 = pneg %p81
      $region30: #{down_forward.2} parent=27 // pred_check_branch
        %341 = sbr.rel (%p339) target = $region32
      $region31: #{down_forward.2} parent=27 // pred_region
        _
      $region32: #{down_forward.2} parent=27 // pred_fallthru
        _
      // Predicated region
      $region33: #{down_forward.2} parent=27 // pred_check
        %p342 = pneg %p107
      $region34: #{down_forward.2} parent=27 // pred_check_branch
        %344 = sbr.rel (%p342) target = $region36
      $region35: #{down_forward.2} parent=27 // pred_region
        _
      $region36: #{down_forward.2} parent=27 // pred_fallthru
        _
      // Predicated region
      $region37: #{down_forward.2} parent=27 // pred_check
        %p345 = pneg %p133
      $region38: #{down_forward.2} parent=27 // pred_check_branch
        %347 = sbr.rel (%p345) target = $region40
      $region39: #{down_forward.2} parent=27 // pred_region
        _
      $region40: #{down_forward.2} parent=27 // pred_fallthru
        _
    $region28: #{down_forward.2} parent=5 // pred_fallthru
      _
    %p348 = scmp.le.s32.totalorder 2, %s11
    // Predicated region
    $region41: #{down_forward.2} parent=5 // pred_check
      %p349 = pneg %p348
    $region42: #{down_forward.2} parent=5 // pred_check_branch
      %351 = sbr.rel (%p349) target = $region44
    $region43: #{down_forward.2} parent=5 // pred_region
      %s352 = ssub.s32 %s11, 2
      // Predicated region
      $region45: #{down_forward.2} parent=43 // pred_check
        %p353 = pneg %p87
      $region46: #{down_forward.2} parent=43 // pred_check_branch
        %355 = sbr.rel (%p353) target = $region48
      $region47: #{down_forward.2} parent=43 // pred_region
        %p356 = scmp.lt.s32.totalorder %s17, 1
        %s357 = scalar_select %p356, %s17, 1
        %s358 = smul.addr %s357, 4
        %s359 = scalar_lea.vmem %s2, %s358
      $region48: #{down_forward.2} parent=43 // pred_fallthru
        _
      // Predicated region
      $region49: #{down_forward.2} parent=43 // pred_check
        %p360 = pneg %p113
      $region50: #{down_forward.2} parent=43 // pred_check_branch
        %362 = sbr.rel (%p360) target = $region52
      $region51: #{down_forward.2} parent=43 // pred_region
        %p363 = scmp.lt.s32.totalorder %s17, 1
        %s364 = scalar_select %p363, %s17, 1
        %s365 = smul.addr %s364, 8
        %s366 = scalar_lea.vmem %s3, %s365
      $region52: #{down_forward.2} parent=43 // pred_fallthru
        _
      // Predicated region
      $region53: #{down_forward.2} parent=43 // pred_check
        %p367 = pneg %p139
      $region54: #{down_forward.2} parent=43 // pred_check_branch
        %369 = sbr.rel (%p367) target = $region56
      $region55: #{down_forward.2} parent=43 // pred_region
        %p370 = scmp.lt.s32.totalorder %s17, 1
        %s371 = scalar_select %p370, %s17, 1
        %s372 = smul.addr %s371, 8
        %s373 = scalar_lea.vmem %s4, %s372
      $region56: #{down_forward.2} parent=43 // pred_fallthru
        _
    $region44: #{down_forward.2} parent=5 // pred_fallthru
      _
  $region6: #{down_forward.2} parent=0 // loop_footer
    %s15 = sadd.s32 1, %s11
  $region7: #{down_forward.2} parent=0 // loop_footer_branch
    %10 = sbr.rel target = $region3
  $region8: #{down_forward.2} parent=0 // loop_exit
    _

</llo_original>
